<compile_context>
chip_gen: v7x
topology: tpu7x:2x2x1
jax: 0.10.0
libtpu: 0.0.40
codegen_flags: <defaults>
</compile_context>

<pallas_src>
import jax
import jax.numpy as jnp
from jax.experimental import pallas as pl
from jax.experimental.pallas import tpu as pltpu


# ----------------------------------------------------------------------------
# Pallas kernel: ONE grid step processes all B snapshots.
#   ax  = Abig @ Xs                      (B*N, F)
#   h1  = relu(ax @ W1 + b1)             (B*N, H1)
#   S   = Rbig @ h1                      (B, H1)    -- per-snapshot node mean
#   out = S @ W2fc + bout                (B, OUT)
# ----------------------------------------------------------------------------
def weather_gnn_kernel(abig_ref, rbig_ref, xs_ref, w1_ref, b1_ref,
                       w2fc_ref, bout_ref, out_ref):
    ax = jnp.dot(abig_ref[...], xs_ref[...],
                 preferred_element_type=jnp.float32)                  # (BN, F)
    h1 = jnp.dot(ax, w1_ref[...],
                 preferred_element_type=jnp.float32) + b1_ref[...]    # (BN, H1)
    h1 = jnp.maximum(h1, 0.0)

    s = jnp.dot(rbig_ref[...], h1,
                preferred_element_type=jnp.float32)                   # (B, H1)
    out_ref[...] = (jnp.dot(s, w2fc_ref[...],
                            preferred_element_type=jnp.float32)
                    + bout_ref[...])                                  # (B, OUT)


def weather_gnn_forward_batched(ahat, xb, w1, b1, w2, b2, wfc, bfc):
    """WeatherGNN forward for B snapshots sharing one graph.

    ahat: (N, N) normalized adjacency, xb: (B, N, F) node features.
    Returns (B, 3); row b equals the PyTorch module's forward(xb[b], edges).
    """
    B, N, F = xb.shape
    H1 = w1.shape[1]
    OUT = wfc.shape[1]
    BN = B * N

    # Glue-side exact folds / stacking.
    eye_b = jnp.eye(B, dtype=jnp.float32)
    abig = jnp.kron(eye_b, ahat)                          # (BN, BN) block-diag
    r = jnp.mean(ahat, axis=0, keepdims=True)             # (1, N) row-mean
    rbig = jnp.kron(eye_b, r)                             # (B, BN)
    xs = xb.reshape(BN, F)                                # (BN, F)
    w2fc = w2 @ wfc                                       # (H1, OUT)
    bout = b2 @ wfc + bfc                                 # (1, OUT)

    flops = 2 * (BN * BN * F + BN * F * H1 + B * BN * H1 + B * H1 * OUT)
    bytes_accessed = 4 * (BN * BN + B * BN + BN * F + F * H1 + H1
                          + H1 * OUT + OUT + B * OUT)

    out = pl.pallas_call(
        weather_gnn_kernel,
        out_shape=jax.ShapeDtypeStruct((B, OUT), jnp.float32),
        grid=(1,),
        in_specs=[
            pl.BlockSpec((BN, BN), lambda i: (0, 0)),     # Abig
            pl.BlockSpec((B, BN), lambda i: (0, 0)),      # Rbig
            pl.BlockSpec((BN, F), lambda i: (0, 0)),      # stacked X
            pl.BlockSpec((F, H1), lambda i: (0, 0)),      # W1
            pl.BlockSpec((1, H1), lambda i: (0, 0)),      # b1
            pl.BlockSpec((H1, OUT), lambda i: (0, 0)),    # W2 @ Wfc
            pl.BlockSpec((1, OUT), lambda i: (0, 0)),     # b2 @ Wfc + bfc
        ],
        out_specs=pl.BlockSpec((B, OUT), lambda i: (0, 0)),
        compiler_params=pltpu.CompilerParams(
            dimension_semantics=("arbitrary",)),
        cost_estimate=pl.CostEstimate(
            flops=flops, transcendentals=0, bytes_accessed=bytes_accessed),
    )(abig, rbig, xs, w1, b1, w2fc, bout)
    return out


# ----------------------------------------------------------------------------
# Glue: build the GCN normalized adjacency  D^{-1/2} (A + I) D^{-1/2}
# (PyG GCNConv semantics: self-loops, symmetric norm, out[dst] += norm*x[src])
# ----------------------------------------------------------------------------
def build_normalized_adjacency(edge_index, num_nodes):
    src = edge_index[0]
    dst = edge_index[1]
    loops = jnp.arange(num_nodes, dtype=edge_index.dtype)
    src = jnp.concatenate([src, loops])
    dst = jnp.concatenate([dst, loops])
    deg = jnp.zeros((num_nodes,), jnp.float32).at[dst].add(1.0)
    dinv = jnp.where(deg > 0, 1.0 / jnp.sqrt(deg), 0.0)
    norm = dinv[src] * dinv[dst]
    ahat = jnp.zeros((num_nodes, num_nodes), jnp.float32).at[dst, src].add(norm)
    return ahat


def init_params(key, input_size):
    k1, k2, k3 = jax.random.split(key, 3)
    h1, h2, out = 64, 32, 3
    w1 = jax.random.normal(k1, (input_size, h1), jnp.float32) * (2.0 / (input_size + h1)) ** 0.5
    b1 = jnp.zeros((1, h1), jnp.float32)
    w2 = jax.random.normal(k2, (h1, h2), jnp.float32) * (2.0 / (h1 + h2)) ** 0.5
    b2 = jnp.zeros((1, h2), jnp.float32)
    wfc = jax.random.normal(k3, (h2, out), jnp.float32) * (2.0 / (h2 + out)) ** 0.5
    bfc = jnp.zeros((1, out), jnp.float32)
    return w1, b1, w2, b2, wfc, bfc


if __name__ == "__main__":
    key = jax.random.PRNGKey(0)
    num_nodes = 16      # weather stations / grid nodes
    input_size = 4      # features per node (temp, pressure, humidity, wind)
    batch = 4           # weather snapshots sharing the same station graph

    kx, kp = jax.random.split(key)
    xb = jax.random.normal(kx, (batch, num_nodes, input_size), jnp.float32)

    # Deterministic small graph: bidirectional ring over the nodes.
    src = jnp.arange(num_nodes, dtype=jnp.int32)
    dst = (src + 1) % num_nodes
    edge_index = jnp.stack([jnp.concatenate([src, dst]),
                            jnp.concatenate([dst, src])], axis=0)   # (2, 2N)

    ahat = build_normalized_adjacency(edge_index, num_nodes)
    w1, b1, w2, b2, wfc, bfc = init_params(kp, input_size)

    out = weather_gnn_forward_batched(ahat, xb, w1, b1, w2, b2, wfc, bfc)
    out = jax.block_until_ready(out)
    assert out.shape == (batch, 3)

    # Pure-JAX reference: the original (unfolded) forward, per snapshot.
    refs = []
    for b in range(batch):
        h = jnp.maximum(ahat @ (xb[b] @ w1) + b1, 0.0)
        h = ahat @ (h @ w2) + b2
        refs.append(jnp.mean(h @ wfc + bfc, axis=0, keepdims=True))
    ref = jnp.concatenate(refs, axis=0)                              # (B, 3)
    assert jnp.allclose(out, ref, atol=1e-4, rtol=1e-4)

    print("KERNEL_OK")
</pallas_src>

<mosaic_0001>
module attributes {stable_mosaic.version = 11 : i64} {
  func.func @weather_gnn_kernel(%arg0: i32, %arg1: memref<64x64xf32, #tpu.memory_space<vmem>>, %arg2: memref<4x64xf32, #tpu.memory_space<vmem>>, %arg3: memref<64x4xf32, #tpu.memory_space<vmem>>, %arg4: memref<4x64xf32, #tpu.memory_space<vmem>>, %arg5: memref<1x64xf32, #tpu.memory_space<vmem>>, %arg6: memref<64x3xf32, #tpu.memory_space<vmem>>, %arg7: memref<1x3xf32, #tpu.memory_space<vmem>>, %arg8: memref<4x3xf32, #tpu.memory_space<vmem>>) attributes {dimension_semantics = [#tpu.dimension_semantics<arbitrary>], iteration_bounds = array<i64: 1>, scalar_prefetch = 0 : i64, scratch_operands = 0 : i64, tpu.core_type = #tpu.core_type<tc>, window_params = [{pipeline_mode = #tpu.pipeline_mode<synchronous>, transform_indices = @transform_0, window_bounds = array<i64: 64, 64>}, {pipeline_mode = #tpu.pipeline_mode<synchronous>, transform_indices = @transform_1, window_bounds = array<i64: 4, 64>}, {pipeline_mode = #tpu.pipeline_mode<synchronous>, transform_indices = @transform_2, window_bounds = array<i64: 64, 4>}, {pipeline_mode = #tpu.pipeline_mode<synchronous>, transform_indices = @transform_3, window_bounds = array<i64: 4, 64>}, {pipeline_mode = #tpu.pipeline_mode<synchronous>, transform_indices = @transform_4, window_bounds = array<i64: 1, 64>}, {pipeline_mode = #tpu.pipeline_mode<synchronous>, transform_indices = @transform_5, window_bounds = array<i64: 64, 3>}, {pipeline_mode = #tpu.pipeline_mode<synchronous>, transform_indices = @transform_6, window_bounds = array<i64: 1, 3>}, {pipeline_mode = #tpu.pipeline_mode<synchronous>, transform_indices = @transform_7, window_bounds = array<i64: 4, 3>}]} {
    %c0 = arith.constant 0 : index
    %c0_0 = arith.constant 0 : index
    %0 = vector.load %arg1[%c0, %c0_0] : memref<64x64xf32, #tpu.memory_space<vmem>>, vector<64x64xf32>
    %c0_1 = arith.constant 0 : index
    %c0_2 = arith.constant 0 : index
    %1 = vector.load %arg3[%c0_1, %c0_2] : memref<64x4xf32, #tpu.memory_space<vmem>>, vector<64x4xf32>
    %cst = arith.constant dense<0.000000e+00> : vector<64x4xf32>
    %2 = tpu.matmul %0, %1, %cst {dimension_numbers = #tpu.dot_dimension_numbers<[1], [0], [0], [1], [0, 0, 1, 1], [], []>} : vector<64x64xf32>, vector<64x4xf32>, vector<64x4xf32> -> vector<64x4xf32>
    %c0_3 = arith.constant 0 : index
    %c0_4 = arith.constant 0 : index
    %3 = vector.load %arg4[%c0_3, %c0_4] : memref<4x64xf32, #tpu.memory_space<vmem>>, vector<4x64xf32>
    %cst_5 = arith.constant dense<0.000000e+00> : vector<64x64xf32>
    %4 = tpu.matmul %2, %3, %cst_5 {dimension_numbers = #tpu.dot_dimension_numbers<[1], [0], [0], [1], [0, 0, 1, 1], [], []>} : vector<64x4xf32>, vector<4x64xf32>, vector<64x64xf32> -> vector<64x64xf32>
    %c0_6 = arith.constant 0 : index
    %c0_7 = arith.constant 0 : index
    %5 = vector.load %arg5[%c0_6, %c0_7] : memref<1x64xf32, #tpu.memory_space<vmem>>, vector<1x64xf32>
    %6 = vector.broadcast %5 : vector<1x64xf32> to vector<64x64xf32>
    %7 = arith.addf %4, %6 : vector<64x64xf32>
    %cst_8 = arith.constant 0.000000e+00 : f32
    %8 = vector.broadcast %cst_8 : f32 to vector<64x64xf32>
    %9 = arith.maximumf %7, %8 : vector<64x64xf32>
    %c0_9 = arith.constant 0 : index
    %c0_10 = arith.constant 0 : index
    %10 = vector.load %arg2[%c0_9, %c0_10] : memref<4x64xf32, #tpu.memory_space<vmem>>, vector<4x64xf32>
    %cst_11 = arith.constant dense<0.000000e+00> : vector<4x64xf32>
    %11 = tpu.matmul %10, %9, %cst_11 {dimension_numbers = #tpu.dot_dimension_numbers<[1], [0], [0], [1], [0, 0, 1, 1], [], []>} : vector<4x64xf32>, vector<64x64xf32>, vector<4x64xf32> -> vector<4x64xf32>
    %c0_12 = arith.constant 0 : index
    %c0_13 = arith.constant 0 : index
    %12 = vector.load %arg6[%c0_12, %c0_13] : memref<64x3xf32, #tpu.memory_space<vmem>>, vector<64x3xf32>
    %cst_14 = arith.constant dense<0.000000e+00> : vector<4x3xf32>
    %13 = tpu.matmul %11, %12, %cst_14 {dimension_numbers = #tpu.dot_dimension_numbers<[1], [0], [0], [1], [0, 0, 1, 1], [], []>} : vector<4x64xf32>, vector<64x3xf32>, vector<4x3xf32> -> vector<4x3xf32>
    %c0_15 = arith.constant 0 : index
    %c0_16 = arith.constant 0 : index
    %14 = vector.load %arg7[%c0_15, %c0_16] : memref<1x3xf32, #tpu.memory_space<vmem>>, vector<1x3xf32>
    %15 = vector.broadcast %14 : vector<1x3xf32> to vector<4x3xf32>
    %16 = arith.addf %13, %15 : vector<4x3xf32>
    %c0_17 = arith.constant 0 : index
    %c0_18 = arith.constant 0 : index
    %17 = vector.load %arg8[%c0_17, %c0_18] : memref<4x3xf32, #tpu.memory_space<vmem>>, vector<4x3xf32>
    tpu.vector_store %arg8[%c0_17, %c0_18], %16 {strides = array<i32>} : memref<4x3xf32, #tpu.memory_space<vmem>>, vector<4x3xf32>,
    return
  }
  func.func @transform_0(%arg0: i32) -> (i32, i32) {
    %c0_i32 = arith.constant 0 : i32
    %c0_i32_0 = arith.constant 0 : i32
    %c0_i32_1 = arith.constant 0 : i32
    return %c0_i32, %c0_i32_0 : i32, i32
  }
  func.func @transform_1(%arg0: i32) -> (i32, i32) {
    %c0_i32 = arith.constant 0 : i32
    %c0_i32_0 = arith.constant 0 : i32
    %c0_i32_1 = arith.constant 0 : i32
    return %c0_i32, %c0_i32_0 : i32, i32
  }
  func.func @transform_2(%arg0: i32) -> (i32, i32) {
    %c0_i32 = arith.constant 0 : i32
    %c0_i32_0 = arith.constant 0 : i32
    %c0_i32_1 = arith.constant 0 : i32
    return %c0_i32, %c0_i32_0 : i32, i32
  }
  func.func @transform_3(%arg0: i32) -> (i32, i32) {
    %c0_i32 = arith.constant 0 : i32
    %c0_i32_0 = arith.constant 0 : i32
    %c0_i32_1 = arith.constant 0 : i32
    return %c0_i32, %c0_i32_0 : i32, i32
  }
  func.func @transform_4(%arg0: i32) -> (i32, i32) {
    %c0_i32 = arith.constant 0 : i32
    %c0_i32_0 = arith.constant 0 : i32
    %c0_i32_1 = arith.constant 0 : i32
    return %c0_i32, %c0_i32_0 : i32, i32
  }
  func.func @transform_5(%arg0: i32) -> (i32, i32) {
    %c0_i32 = arith.constant 0 : i32
    %c0_i32_0 = arith.constant 0 : i32
    %c0_i32_1 = arith.constant 0 : i32
    return %c0_i32, %c0_i32_0 : i32, i32
  }
  func.func @transform_6(%arg0: i32) -> (i32, i32) {
    %c0_i32 = arith.constant 0 : i32
    %c0_i32_0 = arith.constant 0 : i32
    %c0_i32_1 = arith.constant 0 : i32
    return %c0_i32, %c0_i32_0 : i32, i32
  }
  func.func @transform_7(%arg0: i32) -> (i32, i32) {
    %c0_i32 = arith.constant 0 : i32
    %c0_i32_0 = arith.constant 0 : i32
    %c0_i32_1 = arith.constant 0 : i32
    return %c0_i32, %c0_i32_0 : i32, i32
  }
}

</mosaic_0001>

<llo_original>
// kernel: tpu_custom_call.1
$region0: #{tpu_custom_call.1}
  #allocation0 [shape = 'u32[]', space=smem, size = 0x4, offset = 0x4, fixed_abs, tag = 'smem constant byte address 0x4 - core index']
  #allocation1 [shape = 'u32[144,128]{1,0:T(1,128)}', space=vmem, size = 0x12000, scoped, tag = 'internal scratch']
  %s0 = inlined_call_operand.vmem [shape: f32[64,64], index: 0, kind: input, shape index: {}]
  %s1 = inlined_call_operand.vmem [shape: f32[4,64], index: 1, kind: input, shape index: {}]
  %s2 = inlined_call_operand.vmem [shape: f32[64,4], index: 2, kind: input, shape index: {}]
  %s3 = inlined_call_operand.vmem [shape: f32[4,64], index: 3, kind: input, shape index: {}]
  %s4 = inlined_call_operand.vmem [shape: f32[1,64], index: 4, kind: input, shape index: {}]
  %s5 = inlined_call_operand.vmem [shape: f32[64,3], index: 5, kind: input, shape index: {}]
  %s6 = inlined_call_operand.vmem [shape: f32[1,3], index: 6, kind: input, shape index: {}]
  %s7 = inlined_call_operand.hbm [shape: f32[4,3], index: 7, kind: output, shape index: {}]
  %s8 = sld [smem:[#allocation0]]
  $region38: #{tpu_custom_call.1} parent=0
    _
  %s10 = ssub.s32 1, %s8
  %s11 = scalar_select 0, %s10, %s8
  $region1: #{tpu_custom_call.1} parent=0
    #allocation2 [shape = 'u8[2048]{0}', space=vmem, size = 0x800, scoped, tag = 'output window, operand 0, single buffered']
    #allocation3 [shape = 's32[1]{0}', space=sflag, size = 0x4, scoped, tag = 'scoped memory for tpu_custom_call.1']
    %12 = vsyncpa [#allocation3], 0
    // Predicated region
    $region2: #{tpu_custom_call.1} parent=1 // pred_check
      _
    $region3: #{tpu_custom_call.1} parent=1 // pred_check_branch
      %14 = sbr.rel (0) target = $region5
    $region4: #{tpu_custom_call.1} parent=1 // pred_region
      _
    $region5: #{tpu_custom_call.1} parent=1 // pred_fallthru
      _
    // Predicated region
    $region6: #{tpu_custom_call.1} parent=1 // pred_check
      _
    $region7: #{tpu_custom_call.1} parent=1 // pred_check_branch
      %16 = sbr.rel (0) target = $region9
    $region8: #{tpu_custom_call.1} parent=1 // pred_region
      _
    $region9: #{tpu_custom_call.1} parent=1 // pred_fallthru
      _
    // Predicated region
    $region10: #{tpu_custom_call.1} parent=1 // pred_check
      _
    $region11: #{tpu_custom_call.1} parent=1 // pred_check_branch
      %18 = sbr.rel (0) target = $region13
    $region12: #{tpu_custom_call.1} parent=1 // pred_region
      _
    $region13: #{tpu_custom_call.1} parent=1 // pred_fallthru
      _
    // Predicated region
    $region14: #{tpu_custom_call.1} parent=1 // pred_check
      _
    $region15: #{tpu_custom_call.1} parent=1 // pred_check_branch
      %20 = sbr.rel (0) target = $region17
    $region16: #{tpu_custom_call.1} parent=1 // pred_region
      _
    $region17: #{tpu_custom_call.1} parent=1 // pred_fallthru
      _
    // Predicated region
    $region18: #{tpu_custom_call.1} parent=1 // pred_check
      _
    $region19: #{tpu_custom_call.1} parent=1 // pred_check_branch
      %22 = sbr.rel (0) target = $region21
    $region20: #{tpu_custom_call.1} parent=1 // pred_region
      _
    $region21: #{tpu_custom_call.1} parent=1 // pred_fallthru
      _
    // Predicated region
    $region22: #{tpu_custom_call.1} parent=1 // pred_check
      _
    $region23: #{tpu_custom_call.1} parent=1 // pred_check_branch
      %24 = sbr.rel (0) target = $region25
    $region24: #{tpu_custom_call.1} parent=1 // pred_region
      _
    $region25: #{tpu_custom_call.1} parent=1 // pred_fallthru
      _
    // Predicated region
    $region26: #{tpu_custom_call.1} parent=1 // pred_check
      _
    $region27: #{tpu_custom_call.1} parent=1 // pred_check_branch
      %26 = sbr.rel (0) target = $region29
    $region28: #{tpu_custom_call.1} parent=1 // pred_region
      _
    $region29: #{tpu_custom_call.1} parent=1 // pred_fallthru
      _
    %v27 = vld [vmem:[%s0] sm:$0xff]
    %v28 = vld [vmem:[%s0 + $0x8] sm:$0xff]
    %v29 = vld [vmem:[%s0 + $0x10] sm:$0xff]
    %v30 = vld [vmem:[%s0 + $0x18] sm:$0xff]
    %v31 = vld [vmem:[%s0 + $0x20] sm:$0xff]
    %v32 = vld [vmem:[%s0 + $0x28] sm:$0xff]
    %v33 = vld [vmem:[%s0 + $0x30] sm:$0xff]
    %v34 = vld [vmem:[%s0 + $0x38] sm:$0xff]
    %v35 = vld [vmem:[%s2] sm:$0xff]
    %v36 = vld [vmem:[%s2 + $0x8] sm:$0xff]
    %v37 = vld [vmem:[%s2 + $0x10] sm:$0xff]
    %v38 = vld [vmem:[%s2 + $0x18] sm:$0xff]
    %v39 = vld [vmem:[%s2 + $0x20] sm:$0xff]
    %v40 = vld [vmem:[%s2 + $0x28] sm:$0xff]
    %v41 = vld [vmem:[%s2 + $0x30] sm:$0xff]
    %v42 = vld [vmem:[%s2 + $0x38] sm:$0xff]
    %vm43 = vcmask 523264
    %v45 = vsel %vm43, %v27, 0
    %v48 = vsel %vm43, %v28, 0
    %v51 = vsel %vm43, %v29, 0
    %v54 = vsel %vm43, %v30, 0
    %v57 = vsel %vm43, %v31, 0
    %v60 = vsel %vm43, %v32, 0
    %v63 = vsel %vm43, %v33, 0
    %v66 = vsel %vm43, %v34, 0
    %68 = vmatprep.subr.mxu0 0.0
    %69 = vmatpush1.msra.mxu0 %v35
    %70 = vmatprep.subr.mxu0 0.0
    %71 = vmatpush1.msra.mxu0 %v36
    %72 = vmatprep.subr.mxu0 0.0
    %73 = vmatpush1.msra.mxu0 %v37
    %74 = vmatprep.subr.mxu0 0.0
    %75 = vmatpush1.msra.mxu0 %v38
    %76 = vmatprep.subr.mxu0 0.0
    %77 = vmatpush1.msra.mxu0 %v39
    %78 = vmatprep.subr.mxu0 0.0
    %79 = vmatpush1.msra.mxu0 %v40
    %80 = vmatprep.subr.mxu0 0.0
    %81 = vmatpush1.msra.mxu0 %v41
    %82 = vmatprep.subr.mxu0 0.0
    %83 = vmatpush1.msra.mxu0 %v42
    %84 = vmatprep.subr.mxu0 0.0
    %85 = vmatpush1.msra.mxu0 0.0
    %86 = vmatprep.subr.mxu0 0.0
    %87 = vmatpush1.msra.mxu0 0.0
    %88 = vmatprep.subr.mxu0 0.0
    %89 = vmatpush1.msra.mxu0 0.0
    %90 = vmatprep.subr.mxu0 0.0
    %91 = vmatpush1.msra.mxu0 0.0
    %92 = vmatprep.subr.mxu0 0.0
    %93 = vmatpush1.msra.mxu0 0.0
    %94 = vmatprep.subr.mxu0 0.0
    %95 = vmatpush1.msra.mxu0 0.0
    %96 = vmatprep.subr.mxu0 0.0
    %97 = vmatpush1.msra.mxu0 0.0
    %98 = vmatprep.subr.mxu0 0.0
    %99 = vmatpush1.msra.mxu0 0.0
    %100 = vmatprep.subr.mxu0 0.0
    %101 = vmatpush1.msra.mxu0 0.0
    %102 = vmatprep.subr.mxu0 0.0
    %103 = vmatpush1.msra.mxu0 0.0
    %104 = vmatprep.subr.mxu0 0.0
    %105 = vmatpush1.msra.mxu0 0.0
    %106 = vmatprep.subr.mxu0 0.0
    %107 = vmatpush1.msra.mxu0 0.0
    %108 = vmatprep.subr.mxu0 0.0
    %109 = vmatpush1.msra.mxu0 0.0
    %110 = vmatprep.subr.mxu0 0.0
    %111 = vmatpush1.msra.mxu0 0.0
    %112 = vmatprep.subr.mxu0 0.0
    %113 = vmatpush1.msra.mxu0 0.0
    %114 = vmatprep.subr.mxu0 0.0
    %115 = vmatpush1.msra.mxu0 0.0
    %116 = vmatprep.subr.mxu0 0.0
    %117 = vmatpush1.msra.mxu0 0.0
    %118 = vmatprep.subr.mxu0 0.0
    %119 = vmatpush1.msra.mxu0 0.0
    %120 = vmatprep.subr.mxu0 0.0
    %121 = vmatpush1.msra.mxu0 0.0
    %122 = vmatprep.subr.mxu0 0.0
    %123 = vmatpush1.msra.mxu0 0.0
    %124 = vmatprep.subr.mxu0 0.0
    %125 = vmatpush1.msra.mxu0 0.0
    %126 = vmatprep.subr.mxu0 0.0
    %127 = vmatpush1.msra.mxu0 0.0
    %128 = vmatprep.subr.mxu0 0.0
    %129 = vmatpush1.msra.mxu0 0.0
    %130 = vmatprep.subr.mxu0 0.0
    %131 = vmatpush1.msra.mxu0 0.0
    %132 = vmatprep.mubr.f32.mxu0 0.0
    %133 = vmatmul.mubr.f32.gmra.mrb[0].mxu0 %v45
    %v134 = vpop.f32.mrb[0].mxu0
    %v135 = vadd.f32 0.0, %v134
    %v136 = vpop.f32.mrb[0].mxu0
    %137 = vmatprep.mubr.f32.mxu0 0.0
    %138 = vmatmul.mubr.f32.gmra.mrb[0].mxu0 %v48
    %v139 = vpop.f32.mrb[0].mxu0
    %v140 = vadd.f32 0.0, %v139
    %v141 = vpop.f32.mrb[0].mxu0
    %142 = vmatprep.mubr.f32.mxu0 0.0
    %143 = vmatmul.mubr.f32.gmra.mrb[0].mxu0 %v51
    %v144 = vpop.f32.mrb[0].mxu0
    %v145 = vadd.f32 0.0, %v144
    %v146 = vpop.f32.mrb[0].mxu0
    %147 = vmatprep.mubr.f32.mxu0 0.0
    %148 = vmatmul.mubr.f32.gmra.mrb[0].mxu0 %v54
    %v149 = vpop.f32.mrb[0].mxu0
    %v150 = vadd.f32 0.0, %v149
    %v151 = vpop.f32.mrb[0].mxu0
    %152 = vmatprep.mubr.f32.mxu0 0.0
    %153 = vmatmul.mubr.f32.gmra.mrb[0].mxu0 %v57
    %v154 = vpop.f32.mrb[0].mxu0
    %v155 = vadd.f32 0.0, %v154
    %v156 = vpop.f32.mrb[0].mxu0
    %157 = vmatprep.mubr.f32.mxu0 0.0
    %158 = vmatmul.mubr.f32.gmra.mrb[0].mxu0 %v60
    %v159 = vpop.f32.mrb[0].mxu0
    %v160 = vadd.f32 0.0, %v159
    %v161 = vpop.f32.mrb[0].mxu0
    %162 = vmatprep.mubr.f32.mxu0 0.0
    %163 = vmatmul.mubr.f32.gmra.mrb[0].mxu0 %v63
    %v164 = vpop.f32.mrb[0].mxu0
    %v165 = vadd.f32 0.0, %v164
    %v166 = vpop.f32.mrb[0].mxu0
    %167 = vmatprep.mubr.f32.mxu0 0.0
    %168 = vmatmul.mubr.f32.gmra.mrb[0].mxu0 %v66
    %v169 = vpop.f32.mrb[0].mxu0
    %v170 = vadd.f32 0.0, %v169
    %v171 = vpop.f32.mrb[0].mxu0
    %172 = vdwg.mxu0
    %v173 = vld [vmem:[%s3] sm:$0xf]
    %v174 = vld [vmem:[%s4] sm:$0x1]
    %v176 = vlaneseq
    %v177 = vshrl.u32 %v176, 7
    %v178 = vsub.s32 0, %v177
    %v179 = vrot.slane %v174, %v178
    %vm181 = vcmask 31744
    %v183 = vsel %vm181, %v135, 0
    %v186 = vsel %vm181, %v140, 0
    %v189 = vsel %vm181, %v145, 0
    %v192 = vsel %vm181, %v150, 0
    %v195 = vsel %vm181, %v155, 0
    %v198 = vsel %vm181, %v160, 0
    %v201 = vsel %vm181, %v165, 0
    %v204 = vsel %vm181, %v170, 0
    %vm206 = vcmask 1043456
    %v208 = vsel %vm206, %v173, 0
    %210 = vmatprep.subr.mxu0 0.0
    %211 = vmatpush1.msra.mxu0 %v208
    %212 = vmatprep.subr.mxu0 0.0
    %213 = vmatpush1.msra.mxu0 0.0
    %214 = vmatprep.subr.mxu0 0.0
    %215 = vmatpush1.msra.mxu0 0.0
    %216 = vmatprep.subr.mxu0 0.0
    %217 = vmatpush1.msra.mxu0 0.0
    %218 = vmatprep.subr.mxu0 0.0
    %219 = vmatpush1.msra.mxu0 0.0
    %220 = vmatprep.subr.mxu0 0.0
    %221 = vmatpush1.msra.mxu0 0.0
    %222 = vmatprep.subr.mxu0 0.0
    %223 = vmatpush1.msra.mxu0 0.0
    %224 = vmatprep.subr.mxu0 0.0
    %225 = vmatpush1.msra.mxu0 0.0
    %226 = vmatprep.subr.mxu0 0.0
    %227 = vmatpush1.msra.mxu0 0.0
    %228 = vmatprep.subr.mxu0 0.0
    %229 = vmatpush1.msra.mxu0 0.0
    %230 = vmatprep.subr.mxu0 0.0
    %231 = vmatpush1.msra.mxu0 0.0
    %232 = vmatprep.subr.mxu0 0.0
    %233 = vmatpush1.msra.mxu0 0.0
    %234 = vmatprep.subr.mxu0 0.0
    %235 = vmatpush1.msra.mxu0 0.0
    %236 = vmatprep.subr.mxu0 0.0
    %237 = vmatpush1.msra.mxu0 0.0
    %238 = vmatprep.subr.mxu0 0.0
    %239 = vmatpush1.msra.mxu0 0.0
    %240 = vmatprep.subr.mxu0 0.0
    %241 = vmatpush1.msra.mxu0 0.0
    %242 = vmatprep.subr.mxu0 0.0
    %243 = vmatpush1.msra.mxu0 0.0
    %244 = vmatprep.subr.mxu0 0.0
    %245 = vmatpush1.msra.mxu0 0.0
    %246 = vmatprep.subr.mxu0 0.0
    %247 = vmatpush1.msra.mxu0 0.0
    %248 = vmatprep.subr.mxu0 0.0
    %249 = vmatpush1.msra.mxu0 0.0
    %250 = vmatprep.subr.mxu0 0.0
    %251 = vmatpush1.msra.mxu0 0.0
    %252 = vmatprep.subr.mxu0 0.0
    %253 = vmatpush1.msra.mxu0 0.0
    %254 = vmatprep.subr.mxu0 0.0
    %255 = vmatpush1.msra.mxu0 0.0
    %256 = vmatprep.subr.mxu0 0.0
    %257 = vmatpush1.msra.mxu0 0.0
    %258 = vmatprep.subr.mxu0 0.0
    %259 = vmatpush1.msra.mxu0 0.0
    %260 = vmatprep.subr.mxu0 0.0
    %261 = vmatpush1.msra.mxu0 0.0
    %262 = vmatprep.subr.mxu0 0.0
    %263 = vmatpush1.msra.mxu0 0.0
    %264 = vmatprep.subr.mxu0 0.0
    %265 = vmatpush1.msra.mxu0 0.0
    %266 = vmatprep.subr.mxu0 0.0
    %267 = vmatpush1.msra.mxu0 0.0
    %268 = vmatprep.subr.mxu0 0.0
    %269 = vmatpush1.msra.mxu0 0.0
    %270 = vmatprep.subr.mxu0 0.0
    %271 = vmatpush1.msra.mxu0 0.0
    %272 = vmatprep.subr.mxu0 0.0
    %273 = vmatpush1.msra.mxu0 0.0
    %274 = vmatprep.mubr.f32.mxu0 0.0
    %275 = vmatmul.mubr.f32.gmra.mrb[0].mxu0 %v183
    %v276 = vpop.f32.mrb[0].mxu0
    %v277 = vadd.f32 %v179, %v276
    %v278 = vpop.f32.mrb[0].mxu0
    %279 = vmatprep.mubr.f32.mxu0 0.0
    %280 = vmatmul.mubr.f32.gmra.mrb[0].mxu0 %v186
    %v281 = vpop.f32.mrb[0].mxu0
    %v282 = vadd.f32 %v179, %v281
    %v283 = vpop.f32.mrb[0].mxu0
    %284 = vmatprep.mubr.f32.mxu0 0.0
    %285 = vmatmul.mubr.f32.gmra.mrb[0].mxu0 %v189
    %v286 = vpop.f32.mrb[0].mxu0
    %v287 = vadd.f32 %v179, %v286
    %v288 = vpop.f32.mrb[0].mxu0
    %289 = vmatprep.mubr.f32.mxu0 0.0
    %290 = vmatmul.mubr.f32.gmra.mrb[0].mxu0 %v192
    %v291 = vpop.f32.mrb[0].mxu0
    %v292 = vadd.f32 %v179, %v291
    %v293 = vpop.f32.mrb[0].mxu0
    %294 = vmatprep.mubr.f32.mxu0 0.0
    %295 = vmatmul.mubr.f32.gmra.mrb[0].mxu0 %v195
    %v296 = vpop.f32.mrb[0].mxu0
    %v297 = vadd.f32 %v179, %v296
    %v298 = vpop.f32.mrb[0].mxu0
    %299 = vmatprep.mubr.f32.mxu0 0.0
    %300 = vmatmul.mubr.f32.gmra.mrb[0].mxu0 %v198
    %v301 = vpop.f32.mrb[0].mxu0
    %v302 = vadd.f32 %v179, %v301
    %v303 = vpop.f32.mrb[0].mxu0
    %304 = vmatprep.mubr.f32.mxu0 0.0
    %305 = vmatmul.mubr.f32.gmra.mrb[0].mxu0 %v201
    %v306 = vpop.f32.mrb[0].mxu0
    %v307 = vadd.f32 %v179, %v306
    %v308 = vpop.f32.mrb[0].mxu0
    %309 = vmatprep.mubr.f32.mxu0 0.0
    %310 = vmatmul.mubr.f32.gmra.mrb[0].mxu0 %v204
    %v311 = vpop.f32.mrb[0].mxu0
    %v312 = vadd.f32 %v179, %v311
    %v313 = vpop.f32.mrb[0].mxu0
    %314 = vdwg.mxu0
    %v315 = vmax.f32 %v277, 0.0
    %v316 = vmax.f32 %v282, 0.0
    %v317 = vmax.f32 %v287, 0.0
    %v318 = vmax.f32 %v292, 0.0
    %v319 = vmax.f32 %v297, 0.0
    %v320 = vmax.f32 %v302, 0.0
    %v321 = vmax.f32 %v307, 0.0
    %v322 = vmax.f32 %v312, 0.0
    %v323 = vld [vmem:[%s1] sm:$0xf]
    %v325 = vsel %vm43, %v323, 0
    %327 = vmatprep.subr.mxu0 0.0
    %328 = vmatpush1.msra.mxu0 %v315
    %329 = vmatprep.subr.mxu0 0.0
    %330 = vmatpush1.msra.mxu0 %v316
    %331 = vmatprep.subr.mxu0 0.0
    %332 = vmatpush1.msra.mxu0 %v317
    %333 = vmatprep.subr.mxu0 0.0
    %334 = vmatpush1.msra.mxu0 %v318
    %335 = vmatprep.subr.mxu0 0.0
    %336 = vmatpush1.msra.mxu0 %v319
    %337 = vmatprep.subr.mxu0 0.0
    %338 = vmatpush1.msra.mxu0 %v320
    %339 = vmatprep.subr.mxu0 0.0
    %340 = vmatpush1.msra.mxu0 %v321
    %341 = vmatprep.subr.mxu0 0.0
    %342 = vmatpush1.msra.mxu0 %v322
    %343 = vmatprep.subr.mxu0 0.0
    %344 = vmatpush1.msra.mxu0 0.0
    %345 = vmatprep.subr.mxu0 0.0
    %346 = vmatpush1.msra.mxu0 0.0
    %347 = vmatprep.subr.mxu0 0.0
    %348 = vmatpush1.msra.mxu0 0.0
    %349 = vmatprep.subr.mxu0 0.0
    %350 = vmatpush1.msra.mxu0 0.0
    %351 = vmatprep.subr.mxu0 0.0
    %352 = vmatpush1.msra.mxu0 0.0
    %353 = vmatprep.subr.mxu0 0.0
    %354 = vmatpush1.msra.mxu0 0.0
    %355 = vmatprep.subr.mxu0 0.0
    %356 = vmatpush1.msra.mxu0 0.0
    %357 = vmatprep.subr.mxu0 0.0
    %358 = vmatpush1.msra.mxu0 0.0
    %359 = vmatprep.subr.mxu0 0.0
    %360 = vmatpush1.msra.mxu0 0.0
    %361 = vmatprep.subr.mxu0 0.0
    %362 = vmatpush1.msra.mxu0 0.0
    %363 = vmatprep.subr.mxu0 0.0
    %364 = vmatpush1.msra.mxu0 0.0
    %365 = vmatprep.subr.mxu0 0.0
    %366 = vmatpush1.msra.mxu0 0.0
    %367 = vmatprep.subr.mxu0 0.0
    %368 = vmatpush1.msra.mxu0 0.0
    %369 = vmatprep.subr.mxu0 0.0
    %370 = vmatpush1.msra.mxu0 0.0
    %371 = vmatprep.subr.mxu0 0.0
    %372 = vmatpush1.msra.mxu0 0.0
    %373 = vmatprep.subr.mxu0 0.0
    %374 = vmatpush1.msra.mxu0 0.0
    %375 = vmatprep.subr.mxu0 0.0
    %376 = vmatpush1.msra.mxu0 0.0
    %377 = vmatprep.subr.mxu0 0.0
    %378 = vmatpush1.msra.mxu0 0.0
    %379 = vmatprep.subr.mxu0 0.0
    %380 = vmatpush1.msra.mxu0 0.0
    %381 = vmatprep.subr.mxu0 0.0
    %382 = vmatpush1.msra.mxu0 0.0
    %383 = vmatprep.subr.mxu0 0.0
    %384 = vmatpush1.msra.mxu0 0.0
    %385 = vmatprep.subr.mxu0 0.0
    %386 = vmatpush1.msra.mxu0 0.0
    %387 = vmatprep.subr.mxu0 0.0
    %388 = vmatpush1.msra.mxu0 0.0
    %389 = vmatprep.subr.mxu0 0.0
    %390 = vmatpush1.msra.mxu0 0.0
    %391 = vmatprep.mubr.f32.mxu0 0.0
    %392 = vmatmul.mubr.f32.gmra.mrb[0].mxu0 %v325
    %v393 = vpop.f32.mrb[0].mxu0
    %v394 = vadd.f32 0.0, %v393
    %v395 = vpop.f32.mrb[0].mxu0
    %396 = vdwg.mxu0
    %v397 = vld [vmem:[%s5] sm:$0xff]
    %v398 = vld [vmem:[%s5 + $0x8] sm:$0xff]
    %v399 = vld [vmem:[%s5 + $0x10] sm:$0xff]
    %v400 = vld [vmem:[%s5 + $0x18] sm:$0xff]
    %v401 = vld [vmem:[%s5 + $0x20] sm:$0xff]
    %v402 = vld [vmem:[%s5 + $0x28] sm:$0xff]
    %v403 = vld [vmem:[%s5 + $0x30] sm:$0xff]
    %v404 = vld [vmem:[%s5 + $0x38] sm:$0xff]
    %v405 = vld [vmem:[%s6] sm:$0x1]
    %v407 = vlaneseq
    %v408 = vshrl.u32 %v407, 7
    %v409 = vsub.s32 0, %v408
    %v410 = vrot.slane %v405, %v409
    %v413 = vsel %vm43, %v394, 0
    %415 = vmatprep.subr.mxu0 0.0
    %416 = vmatpush1.msra.mxu0 %v397
    %417 = vmatprep.subr.mxu0 0.0
    %418 = vmatpush1.msra.mxu0 %v398
    %419 = vmatprep.subr.mxu0 0.0
    %420 = vmatpush1.msra.mxu0 %v399
    %421 = vmatprep.subr.mxu0 0.0
    %422 = vmatpush1.msra.mxu0 %v400
    %423 = vmatprep.subr.mxu0 0.0
    %424 = vmatpush1.msra.mxu0 %v401
    %425 = vmatprep.subr.mxu0 0.0
    %426 = vmatpush1.msra.mxu0 %v402
    %427 = vmatprep.subr.mxu0 0.0
    %428 = vmatpush1.msra.mxu0 %v403
    %429 = vmatprep.subr.mxu0 0.0
    %430 = vmatpush1.msra.mxu0 %v404
    %431 = vmatprep.subr.mxu0 0.0
    %432 = vmatpush1.msra.mxu0 0.0
    %433 = vmatprep.subr.mxu0 0.0
    %434 = vmatpush1.msra.mxu0 0.0
    %435 = vmatprep.subr.mxu0 0.0
    %436 = vmatpush1.msra.mxu0 0.0
    %437 = vmatprep.subr.mxu0 0.0
    %438 = vmatpush1.msra.mxu0 0.0
    %439 = vmatprep.subr.mxu0 0.0
    %440 = vmatpush1.msra.mxu0 0.0
    %441 = vmatprep.subr.mxu0 0.0
    %442 = vmatpush1.msra.mxu0 0.0
    %443 = vmatprep.subr.mxu0 0.0
    %444 = vmatpush1.msra.mxu0 0.0
    %445 = vmatprep.subr.mxu0 0.0
    %446 = vmatpush1.msra.mxu0 0.0
    %447 = vmatprep.subr.mxu0 0.0
    %448 = vmatpush1.msra.mxu0 0.0
    %449 = vmatprep.subr.mxu0 0.0
    %450 = vmatpush1.msra.mxu0 0.0
    %451 = vmatprep.subr.mxu0 0.0
    %452 = vmatpush1.msra.mxu0 0.0
    %453 = vmatprep.subr.mxu0 0.0
    %454 = vmatpush1.msra.mxu0 0.0
    %455 = vmatprep.subr.mxu0 0.0
    %456 = vmatpush1.msra.mxu0 0.0
    %457 = vmatprep.subr.mxu0 0.0
    %458 = vmatpush1.msra.mxu0 0.0
    %459 = vmatprep.subr.mxu0 0.0
    %460 = vmatpush1.msra.mxu0 0.0
    %461 = vmatprep.subr.mxu0 0.0
    %462 = vmatpush1.msra.mxu0 0.0
    %463 = vmatprep.subr.mxu0 0.0
    %464 = vmatpush1.msra.mxu0 0.0
    %465 = vmatprep.subr.mxu0 0.0
    %466 = vmatpush1.msra.mxu0 0.0
    %467 = vmatprep.subr.mxu0 0.0
    %468 = vmatpush1.msra.mxu0 0.0
    %469 = vmatprep.subr.mxu0 0.0
    %470 = vmatpush1.msra.mxu0 0.0
    %471 = vmatprep.subr.mxu0 0.0
    %472 = vmatpush1.msra.mxu0 0.0
    %473 = vmatprep.subr.mxu0 0.0
    %474 = vmatpush1.msra.mxu0 0.0
    %475 = vmatprep.subr.mxu0 0.0
    %476 = vmatpush1.msra.mxu0 0.0
    %477 = vmatprep.subr.mxu0 0.0
    %478 = vmatpush1.msra.mxu0 0.0
    %479 = vmatprep.mubr.f32.mxu0 0.0
    %480 = vmatmul.mubr.f32.gmra.mrb[0].mxu0 %v413
    %v481 = vpop.f32.mrb[0].mxu0
    %v482 = vadd.f32 %v410, %v481
    %v483 = vpop.f32.mrb[0].mxu0
    %484 = vdwg.mxu0
    %vm485 = vcmask 19456
    %486 = vst.msk [vmem:[#allocation2] sm:$0xf] %vm485, %v482
    // Predicated region
    $region30: #{tpu_custom_call.1} parent=1 // pred_check
      _
    $region31: #{tpu_custom_call.1} parent=1 // pred_check_branch
      %488 = sbr.rel (0) target = $region33
    $region32: #{tpu_custom_call.1} parent=1 // pred_region
      %s490 = ssub.s32 64, 64
      %491 = vsyncadd [#allocation3], %s490
      %s493 = sshll.u32 [#allocation2], 4
      %s494 = int_to_ptr.vmem [resolvable:$true] %s493
      %496 = dma.vmem_to_hbm [thread:$0]  %s494, 64, %s7, [#allocation3]
    $region33: #{tpu_custom_call.1} parent=1 // pred_fallthru
      _
    // Predicated region
    $region34: #{tpu_custom_call.1} parent=1 // pred_check
      _
    $region35: #{tpu_custom_call.1} parent=1 // pred_check_branch
      %498 = sbr.rel (0) target = $region37
    $region36: #{tpu_custom_call.1} parent=1 // pred_region
      %499 = dma.done [#allocation3], 64
    $region37: #{tpu_custom_call.1} parent=1 // pred_fallthru
      _
    %500 = vsyncpa [#allocation3], 1

</llo_original>
